<compile_context>
chip_gen: v5e
topology: v5e:2x2
jax: 0.10.0
libtpu: 0.0.40
codegen_flags: <defaults>
</compile_context>

<pallas_src>
import functools

import jax
import jax.numpy as jnp
from jax import lax
from jax.experimental import pallas as pl
from jax.experimental.pallas import tpu as pltpu

EPS = 1e-12  # F.normalize default eps


def _l2n_lastdim(x):
    # F.normalize(x, dim=-1): x / max(||x||_2, eps) == x * rsqrt(max(sum(x^2), eps^2))
    ss = jnp.sum(x * x, axis=-1, keepdims=True)
    return x * lax.rsqrt(jnp.maximum(ss, EPS * EPS))


def _cates_tile(cores_bf, items_t_bf, inv_tau):
    # softmax over K of (items_n @ cores_n^T / tau), computed transposed as
    # (K, tile_n) with softmax along axis 0.  Per-item softmax -> tileable along N.
    cl = jnp.dot(cores_bf, items_t_bf, preferred_element_type=jnp.float32) * inv_tau
    cl = cl - jnp.max(cl, axis=0, keepdims=True)
    e = jnp.exp(cl)
    return e / jnp.sum(e, axis=0, keepdims=True)


def encode_kernel(x_ref, items_t_ref, cores_ref, w0_ref, b0_ref, w1_ref, b1_ref,
                  out_ref, acc_ref, ss_ref, *, inv_tau, kfac, batch, lat):
    """Phase 1: accumulate the encoder contraction over N tiles; finalize at last tile.

    out_ref is a lane-dense (K*B, 2L) slab:
      [:, :L] = F.normalize(mu), [:, L:] = lnvarq_sub_lnvar0.
    """
    f32, bf16 = jnp.float32, jnp.bfloat16
    t = pl.program_id(0)

    @pl.when(t == 0)
    def _init():
        acc_ref[...] = jnp.zeros_like(acc_ref)
        ss_ref[...] = jnp.zeros_like(ss_ref)

    items_t = items_t_ref[...]                                # (D, tile_n) bf16, pre-normalized
    cates = _cates_tile(cores_ref[...], items_t, inv_tau)     # (K, tile_n) f32

    x = x_ref[...]                                            # (B, tile_n) f32
    x_all = (x[None, :, :] * cates[:, None, :]).reshape(kfac * batch, -1)  # (K*B, tile_n)

    # encode: h = tanh(normalize(x_k) @ W0 + b0); normalize is a per-row scalar, so we
    # accumulate the raw contraction and the row sum-of-squares and rescale at the end.
    ss_ref[...] += jnp.sum(x_all * x_all, axis=-1, keepdims=True)
    acc_ref[...] += jnp.dot(x_all.astype(bf16), w0_ref[...], preferred_element_type=f32)

    @pl.when(t == pl.num_programs(0) - 1)
    def _finalize():
        inv_norm = lax.rsqrt(jnp.maximum(ss_ref[...], EPS * EPS))            # (K*B, 1)
        h = jnp.tanh(acc_ref[...] * inv_norm + b0_ref[...])                  # (K*B, H)
        h2 = jnp.dot(h.astype(bf16), w1_ref[...],
                     preferred_element_type=f32) + b1_ref[...]               # (K*B, 2L)
        lane = lax.broadcasted_iota(jnp.int32, h2.shape, 1)
        is_mu = lane < lat
        mu_raw = jnp.where(is_mu, h2, 0.0)
        mu_inv = lax.rsqrt(jnp.maximum(
            jnp.sum(mu_raw * mu_raw, axis=-1, keepdims=True), EPS * EPS))
        # left half: F.normalize(mu); right half: lnvarq_sub_lnvar0 = -(h@W1_lv + b1_lv)
        out_ref[...] = jnp.where(is_mu, h2 * mu_inv, -h2)


def decode_kernel(mu_ref, items_t_ref, cores_ref, logits_ref, *, inv_tau, kfac, batch):
    """Phase 2: per-N-tile decode; never materializes a (K*B, N) intermediate."""
    f32 = jnp.float32
    items_t = items_t_ref[...]                                # (D, tile_n) bf16
    cates = _cates_tile(cores_ref[...], items_t, inv_tau)     # (K, tile_n) f32

    lg = jnp.dot(mu_ref[...], items_t, preferred_element_type=f32) * inv_tau  # (K*B, tile_n)
    probs = jnp.sum(jnp.exp(lg).reshape(kfac, batch, -1) * cates[:, None, :], axis=0)
    logits_ref[...] = jnp.log(probs)                          # (B, tile_n)


def _pick_tile_n(n):
    # Largest multiple-of-128 divisor of n, capped at 2048 (>=512 lanes reaches ~85%
    # of the HBM roofline per measured tiled-stream data); fall back to one full tile.
    t = min(2048, (n // 128) * 128)
    while t >= 128:
        if n % t == 0:
            return t
        t -= 128
    return n


def _vmem_limit_bytes():
    cap = 128 * 1024 * 1024
    try:
        cap = int(getattr(pltpu.get_tpu_info(), "vmem_capacity_bytes", cap))
    except Exception:
        pass
    # Leave headroom for internal scratch / pipeline buffers: ~48 MiB on v7x (64 MiB
    # physical per TC), ~100 MiB on v5e/v6e (128 MiB physical).
    return int(max(32 * 1024 * 1024, min(cap - 16 * 1024 * 1024, 100 * 1024 * 1024)))


def multivae_forward(x, items, cores, w0t, b0, w1t, b1, *, tau, tile_n=None):
    """Eval-mode forward.

    Returns (lnvarq_sub_lnvar0 stacked (K, B, L), logits (B, N)) -- matching the
    module's (std_list, logits): std_list[k] is lnvarq_sub_lnvar0_k (NOT a std-dev).
    """
    B, N = x.shape
    K, D = cores.shape
    L = D
    H = w0t.shape[1]
    assert w1t.shape == (H, 2 * L)
    f32, bf16 = jnp.float32, jnp.bfloat16
    inv_tau = 1.0 / tau

    if tile_n is None:
        tile_n = _pick_tile_n(N)
    assert N % tile_n == 0, "tile_n must divide N"
    nt = N // tile_n
    kb = K * B

    # Normalize the (constant) item/core tables once in f32 in the wrapper; stream
    # the MXU operands as bf16.  x stays f32 (only matmul operands cast in-kernel).
    # TODO(synk): cache items_t_bf / cores_bf across calls (they are parameters).
    items_t_bf = _l2n_lastdim(items.astype(f32)).T.astype(bf16)   # (D, N)
    cores_bf = _l2n_lastdim(cores.astype(f32)).astype(bf16)       # (K, D)
    w0_bf = w0t.astype(bf16)                                      # (N, H)
    w1_bf = w1t.astype(bf16)                                      # (H, 2L) fused, lane-dense
    x_f = x.astype(f32)
    b0_f = b0.astype(f32)
    b1_f = b1.astype(f32)

    vmem_limit = _vmem_limit_bytes()

    # ---- phase 1: encoder (reduction over N tiles, 'arbitrary') ----
    enc_cost = pl.CostEstimate(
        flops=2 * K * D * N + 2 * kb * N * H + 2 * kb * H * 2 * L,
        transcendentals=K * N + kb * H,
        bytes_accessed=(B * N * 4 + D * N * 2 + K * D * 2 + N * H * 2
                        + H * 4 + H * 2 * L * 2 + 2 * L * 4 + kb * 2 * L * 4),
    )
    combined = pl.pallas_call(
        functools.partial(encode_kernel, inv_tau=inv_tau, kfac=K, batch=B, lat=L),
        out_shape=jax.ShapeDtypeStruct((kb, 2 * L), f32),
        grid_spec=pltpu.PrefetchScalarGridSpec(
            num_scalar_prefetch=0,
            grid=(nt,),
            in_specs=[
                pl.BlockSpec((B, tile_n), lambda t: (0, t)),      # x (f32)
                pl.BlockSpec((D, tile_n), lambda t: (0, t)),      # items^T (bf16, normalized)
                pl.BlockSpec((K, D), lambda t: (0, 0)),           # cores (bf16, normalized)
                pl.BlockSpec((tile_n, H), lambda t: (t, 0)),      # W0 (bf16)
                pl.BlockSpec((1, H), lambda t: (0, 0)),           # b0 (f32)
                pl.BlockSpec((H, 2 * L), lambda t: (0, 0)),       # W1 fused (bf16)
                pl.BlockSpec((1, 2 * L), lambda t: (0, 0)),       # b1 (f32)
            ],
            out_specs=pl.BlockSpec((kb, 2 * L), lambda t: (0, 0)),
            scratch_shapes=[pltpu.VMEM((kb, H), f32),             # encoder contraction acc
                            pltpu.VMEM((kb, 1), f32)],            # row sum-of-squares acc
        ),
        compiler_params=pltpu.CompilerParams(
            dimension_semantics=("arbitrary",),
            vmem_limit_bytes=vmem_limit),
        cost_estimate=enc_cost,
    )(x_f, items_t_bf, cores_bf, w0_bf, b0_f, w1_bf, b1_f)

    mu_bf = combined[:, :L].astype(bf16)                          # (K*B, L)
    lnvarq_sub_lnvar0 = combined[:, L:].reshape(K, B, L)

    # ---- phase 2: decode (independent N tiles -> 'parallel' for v7x megacore) ----
    dec_cost = pl.CostEstimate(
        flops=2 * K * D * N + 2 * kb * L * N,
        transcendentals=K * N + kb * N + B * N,
        bytes_accessed=kb * L * 2 + D * N * 2 + K * D * 2 + B * N * 4,
    )
    logits = pl.pallas_call(
        functools.partial(decode_kernel, inv_tau=inv_tau, kfac=K, batch=B),
        out_shape=jax.ShapeDtypeStruct((B, N), f32),
        grid_spec=pltpu.PrefetchScalarGridSpec(
            num_scalar_prefetch=0,
            grid=(nt,),
            in_specs=[
                pl.BlockSpec((kb, L), lambda t: (0, 0)),          # mu (bf16)
                pl.BlockSpec((D, tile_n), lambda t: (0, t)),      # items^T (bf16)
                pl.BlockSpec((K, D), lambda t: (0, 0)),           # cores (bf16)
            ],
            out_specs=pl.BlockSpec((B, tile_n), lambda t: (0, t)),
        ),
        compiler_params=pltpu.CompilerParams(
            dimension_semantics=("parallel",),
            vmem_limit_bytes=vmem_limit),
        cost_estimate=dec_cost,
    )(mu_bf, items_t_bf, cores_bf)

    return lnvarq_sub_lnvar0, logits


# ----------------------------------------------------------------------------
# References
# ----------------------------------------------------------------------------
def multivae_ref_mixed(x, items, cores, w0t, b0, w1t, b1, *, tau):
    """XLA reference mirroring the kernel's bf16-operand / f32-accumulate math."""
    bf16, f32 = jnp.bfloat16, jnp.float32
    K, L = cores.shape
    inv_tau = 1.0 / tau
    items_n = _l2n_lastdim(items.astype(f32))
    cores_n = _l2n_lastdim(cores.astype(f32))
    itn_bf = items_n.astype(bf16)
    con_bf = cores_n.astype(bf16)
    w0_bf = w0t.astype(bf16)
    w1_bf = w1t.astype(bf16)

    cl = jnp.dot(con_bf, itn_bf.T, preferred_element_type=f32) * inv_tau   # (K, N)
    cates = jax.nn.softmax(cl, axis=0)                                     # (K, N)

    probs = jnp.zeros((x.shape[0], items.shape[0]), f32)
    lnvars = []
    for k in range(K):
        ck = cates[k][None, :]
        xk = x.astype(f32) * ck
        ss = jnp.sum(xk * xk, axis=-1, keepdims=True)
        contr = jnp.dot(xk.astype(bf16), w0_bf, preferred_element_type=f32)
        h = jnp.tanh(contr * lax.rsqrt(jnp.maximum(ss, EPS * EPS)) + b0)
        h2 = jnp.dot(h.astype(bf16), w1_bf, preferred_element_type=f32) + b1
        mu = _l2n_lastdim(h2[:, :L])
        lnvars.append(-h2[:, L:])
        z = mu.astype(bf16)
        logits_k = jnp.dot(z, itn_bf.T, preferred_element_type=f32) * inv_tau
        probs = probs + jnp.exp(logits_k) * ck
    return jnp.stack(lnvars), jnp.log(probs)


def multivae_ref_f32(x, items, cores, w0t, b0, w1t, b1, *, tau):
    """Pure-f32 reference of the module's eval-mode forward."""
    L = cores.shape[1]
    items_n = _l2n_lastdim(items)
    cores_n = _l2n_lastdim(cores)
    cates = jax.nn.softmax(items_n @ cores_n.T / tau, axis=1)   # (N, K)
    probs = jnp.zeros((x.shape[0], items.shape[0]), jnp.float32)
    lnvars = []
    for k in range(cores.shape[0]):
        ck = cates[:, k][None, :]
        xk = x * ck
        h = _l2n_lastdim(xk)
        h = jnp.tanh(h @ w0t + b0)
        h2 = h @ w1t + b1
        mu = _l2n_lastdim(h2[:, :L])
        lnvars.append(-h2[:, L:])
        z = _l2n_lastdim(mu)
        probs = probs + jnp.exp(z @ items_n.T / tau) * ck
    return jnp.stack(lnvars), jnp.log(probs)


if __name__ == "__main__":
    # p_dims = [L, H, N] -> q_dims = [N, H, L]; q_layers: N->H, H->2L
    B, N, H, L, K = 8, 512, 128, 64, 7
    tau = 0.1

    key = jax.random.PRNGKey(0)
    ks = jax.random.split(key, 7)

    # init_weights(): weight ~ N(0, sqrt(2/(fan_in+fan_out))), bias ~ N(0, 0.001)
    std0 = (2.0 / (N + H)) ** 0.5
    w0t = (jax.random.normal(ks[0], (H, N), jnp.float32) * std0).T      # (N, H)
    b0 = jax.random.normal(ks[1], (1, H), jnp.float32) * 0.001
    std1 = (2.0 / (H + 2 * L)) ** 0.5
    w1t = (jax.random.normal(ks[2], (2 * L, H), jnp.float32) * std1).T  # (H, 2L)
    b1 = jax.random.normal(ks[3], (1, 2 * L), jnp.float32) * 0.001
    # xavier_normal_ for cores (K, D) and items (N, D)
    cores = jax.random.normal(ks[4], (K, L), jnp.float32) * (2.0 / (K + L)) ** 0.5
    items = jax.random.normal(ks[5], (N, L), jnp.float32) * (2.0 / (N + L)) ** 0.5
    x = jax.random.normal(ks[6], (B, N), jnp.float32)

    # Multi-tile path: N=512, tile_n=128 -> 4-step grids in both phases.
    stds, logits = jax.block_until_ready(
        multivae_forward(x, items, cores, w0t, b0, w1t, b1, tau=tau, tile_n=128))
    assert stds.shape == (K, B, L) and logits.shape == (B, N)
    assert bool(jnp.all(jnp.isfinite(stds))) and bool(jnp.all(jnp.isfinite(logits)))

    # Auto-tile path (single full-N tile here) must agree with the tiled path.
    stds_a, logits_a = jax.block_until_ready(
        multivae_forward(x, items, cores, w0t, b0, w1t, b1, tau=tau))
    assert jnp.allclose(stds, stds_a, rtol=0.0, atol=1e-2), "tiled vs full-tile mismatch (stds)"
    assert jnp.allclose(logits, logits_a, rtol=0.0, atol=1e-2), "tiled vs full-tile mismatch (logits)"

    # Tight check vs a reference mirroring the kernel's bf16/f32 working precision.
    stds_rm, logits_rm = multivae_ref_mixed(x, items, cores, w0t, b0, w1t, b1, tau=tau)
    assert jnp.allclose(stds, stds_rm, rtol=0.0, atol=1e-2), "stds mismatch (mixed ref)"
    assert jnp.allclose(logits, logits_rm, rtol=0.0, atol=5e-2), "logits mismatch (mixed ref)"

    # Looser check vs the pure-f32 module semantics (bf16 table/weight rounding is
    # amplified by exp(./tau) with tau=0.1, hence the generous tolerance).
    stds_rf, logits_rf = multivae_ref_f32(x, items, cores, w0t, b0, w1t, b1, tau=tau)
    assert jnp.allclose(stds, stds_rf, rtol=0.0, atol=5e-2), "stds mismatch (f32 ref)"
    assert jnp.allclose(logits, logits_rf, rtol=0.0, atol=5e-1), "logits mismatch (f32 ref)"

    print("KERNEL_OK")
</pallas_src>

<mosaic_0001>
module attributes {stable_mosaic.version = 11 : i64} {
  func.func @encode_kernel(%arg0: i32, %arg1: memref<8x128xf32, #tpu.memory_space<vmem>>, %arg2: memref<64x128xbf16, #tpu.memory_space<vmem>>, %arg3: memref<7x64xbf16, #tpu.memory_space<vmem>>, %arg4: memref<128x128xbf16, #tpu.memory_space<vmem>>, %arg5: memref<1x128xf32, #tpu.memory_space<vmem>>, %arg6: memref<128x128xbf16, #tpu.memory_space<vmem>>, %arg7: memref<1x128xf32, #tpu.memory_space<vmem>>, %arg8: memref<56x128xf32, #tpu.memory_space<vmem>>, %arg9: memref<56x128xf32, #tpu.memory_space<vmem>>, %arg10: memref<56x1xf32, #tpu.memory_space<vmem>>) attributes {dimension_semantics = [#tpu.dimension_semantics<arbitrary>], iteration_bounds = array<i64: 4>, scalar_prefetch = 0 : i64, scratch_operands = 2 : i64, tpu.core_type = #tpu.core_type<tc>, window_params = [{transform_indices = @transform_0, window_bounds = array<i64: 8, 128>}, {transform_indices = @transform_1, window_bounds = array<i64: 64, 128>}, {pipeline_mode = #tpu.pipeline_mode<synchronous>, transform_indices = @transform_2, window_bounds = array<i64: 7, 64>}, {transform_indices = @transform_3, window_bounds = array<i64: 128, 128>}, {pipeline_mode = #tpu.pipeline_mode<synchronous>, transform_indices = @transform_4, window_bounds = array<i64: 1, 128>}, {pipeline_mode = #tpu.pipeline_mode<synchronous>, transform_indices = @transform_5, window_bounds = array<i64: 128, 128>}, {pipeline_mode = #tpu.pipeline_mode<synchronous>, transform_indices = @transform_6, window_bounds = array<i64: 1, 128>}, {pipeline_mode = #tpu.pipeline_mode<synchronous>, transform_indices = @transform_7, window_bounds = array<i64: 56, 128>}]} {
    %c0_i32 = arith.constant 0 : i32
    %0 = arith.cmpi eq, %arg0, %c0_i32 : i32
    %1 = arith.extui %0 : i1 to i32
    %c0_i32_0 = arith.constant 0 : i32
    %2 = arith.cmpi ne, %1, %c0_i32_0 : i32
    scf.if %2 {
      %cst_22 = arith.constant 0.000000e+00 : f32
      %39 = vector.broadcast %cst_22 : f32 to vector<56x128xf32>
      %c0_23 = arith.constant 0 : index
      %c0_24 = arith.constant 0 : index
      %40 = vector.load %arg9[%c0_23, %c0_24] : memref<56x128xf32, #tpu.memory_space<vmem>>, vector<56x128xf32>
      tpu.vector_store %arg9[%c0_23, %c0_24], %39 {strides = array<i32>} : memref<56x128xf32, #tpu.memory_space<vmem>>, vector<56x128xf32>,
      %cst_25 = arith.constant 0.000000e+00 : f32
      %41 = vector.broadcast %cst_25 : f32 to vector<56x1xf32>
      %c0_26 = arith.constant 0 : index
      %c0_27 = arith.constant 0 : index
      %42 = vector.load %arg10[%c0_26, %c0_27] : memref<56x1xf32, #tpu.memory_space<vmem>>, vector<56x1xf32>
      tpu.vector_store %arg10[%c0_26, %c0_27], %41 {strides = array<i32>} : memref<56x1xf32, #tpu.memory_space<vmem>>, vector<56x1xf32>,
    } else {
    }
    %c0 = arith.constant 0 : index
    %c0_1 = arith.constant 0 : index
    %3 = vector.load %arg2[%c0, %c0_1] : memref<64x128xbf16, #tpu.memory_space<vmem>>, vector<64x128xbf16>
    %c0_2 = arith.constant 0 : index
    %c0_3 = arith.constant 0 : index
    %4 = vector.load %arg3[%c0_2, %c0_3] : memref<7x64xbf16, #tpu.memory_space<vmem>>, vector<7x64xbf16>
    %cst = arith.constant dense<0.000000e+00> : vector<7x128xf32>
    %5 = tpu.matmul %4, %3, %cst {dimension_numbers = #tpu.dot_dimension_numbers<[1], [0], [0], [1], [0, 0, 1, 1], [], []>} : vector<7x64xbf16>, vector<64x128xbf16>, vector<7x128xf32> -> vector<7x128xf32>
    %cst_4 = arith.constant 1.000000e+01 : f32
    %6 = vector.broadcast %cst_4 : f32 to vector<7x128xf32>
    %7 = arith.mulf %5, %6 : vector<7x128xf32>
    %cst_5 = arith.constant dense<0xFF800000> : vector<128xf32>
    %8 = vector.multi_reduction <maximumf>, %7, %cst_5 [0] : vector<7x128xf32> to vector<128xf32>
    %9 = vector.shape_cast %8 : vector<128xf32> to vector<1x128xf32>
    %10 = vector.broadcast %9 : vector<1x128xf32> to vector<7x128xf32>
    %11 = arith.subf %7, %10 : vector<7x128xf32>
    %12 = math.exp %11 : vector<7x128xf32>
    %cst_6 = arith.constant dense<0.000000e+00> : vector<128xf32>
    %13 = vector.multi_reduction <add>, %12, %cst_6 [0] : vector<7x128xf32> to vector<128xf32>
    %14 = vector.shape_cast %13 : vector<128xf32> to vector<1x128xf32>
    %15 = vector.broadcast %14 : vector<1x128xf32> to vector<7x128xf32>
    %16 = arith.divf %12, %15 : vector<7x128xf32>
    %c0_7 = arith.constant 0 : index
    %c0_8 = arith.constant 0 : index
    %17 = vector.load %arg1[%c0_7, %c0_8] : memref<8x128xf32, #tpu.memory_space<vmem>>, vector<8x128xf32>
    %18 = vector.shape_cast %17 : vector<8x128xf32> to vector<1x8x128xf32>
    %19 = vector.shape_cast %16 : vector<7x128xf32> to vector<7x1x128xf32>
    %20 = vector.broadcast %18 : vector<1x8x128xf32> to vector<7x8x128xf32>
    %21 = vector.broadcast %19 : vector<7x1x128xf32> to vector<7x8x128xf32>
    %22 = arith.mulf %20, %21 : vector<7x8x128xf32>
    %23 = vector.shape_cast %22 : vector<7x8x128xf32> to vector<56x128xf32>
    %c0_9 = arith.constant 0 : index
    %c0_10 = arith.constant 0 : index
    %24 = vector.load %arg10[%c0_9, %c0_10] : memref<56x1xf32, #tpu.memory_space<vmem>>, vector<56x1xf32>
    %25 = arith.mulf %23, %23 : vector<56x128xf32>
    %cst_11 = arith.constant dense<0.000000e+00> : vector<56xf32>
    %26 = vector.multi_reduction <add>, %25, %cst_11 [1] : vector<56x128xf32> to vector<56xf32>
    %27 = vector.shape_cast %26 : vector<56xf32> to vector<56x1xf32>
    %28 = arith.addf %24, %27 : vector<56x1xf32>
    %c0_12 = arith.constant 0 : index
    %c0_13 = arith.constant 0 : index
    %29 = vector.load %arg10[%c0_12, %c0_13] : memref<56x1xf32, #tpu.memory_space<vmem>>, vector<56x1xf32>
    tpu.vector_store %arg10[%c0_12, %c0_13], %28 {strides = array<i32>} : memref<56x1xf32, #tpu.memory_space<vmem>>, vector<56x1xf32>,
    %c0_14 = arith.constant 0 : index
    %c0_15 = arith.constant 0 : index
    %30 = vector.load %arg9[%c0_14, %c0_15] : memref<56x128xf32, #tpu.memory_space<vmem>>, vector<56x128xf32>
    %31 = arith.truncf %23 : vector<56x128xf32> to vector<56x128xbf16>
    %c0_16 = arith.constant 0 : index
    %c0_17 = arith.constant 0 : index
    %32 = vector.load %arg4[%c0_16, %c0_17] : memref<128x128xbf16, #tpu.memory_space<vmem>>, vector<128x128xbf16>
    %cst_18 = arith.constant dense<0.000000e+00> : vector<56x128xf32>
    %33 = tpu.matmul %31, %32, %cst_18 {dimension_numbers = #tpu.dot_dimension_numbers<[1], [0], [0], [1], [0, 0, 1, 1], [], []>} : vector<56x128xbf16>, vector<128x128xbf16>, vector<56x128xf32> -> vector<56x128xf32>
    %34 = arith.addf %30, %33 : vector<56x128xf32>
    %c0_19 = arith.constant 0 : index
    %c0_20 = arith.constant 0 : index
    %35 = vector.load %arg9[%c0_19, %c0_20] : memref<56x128xf32, #tpu.memory_space<vmem>>, vector<56x128xf32>
    tpu.vector_store %arg9[%c0_19, %c0_20], %34 {strides = array<i32>} : memref<56x128xf32, #tpu.memory_space<vmem>>, vector<56x128xf32>,
    %c3_i32 = arith.constant 3 : i32
    %36 = arith.cmpi eq, %arg0, %c3_i32 : i32
    %37 = arith.extui %36 : i1 to i32
    %c0_i32_21 = arith.constant 0 : i32
    %38 = arith.cmpi ne, %37, %c0_i32_21 : i32
    scf.if %38 {
      %c0_22 = arith.constant 0 : index
      %c0_23 = arith.constant 0 : index
      %39 = vector.load %arg10[%c0_22, %c0_23] : memref<56x1xf32, #tpu.memory_space<vmem>>, vector<56x1xf32>
      %cst_24 = arith.constant 1.000000e-24 : f32
      %40 = vector.broadcast %cst_24 : f32 to vector<56x1xf32>
      %41 = arith.maximumf %39, %40 : vector<56x1xf32>
      %42 = math.rsqrt %41 : vector<56x1xf32>
      %c0_25 = arith.constant 0 : index
      %c0_26 = arith.constant 0 : index
      %43 = vector.load %arg9[%c0_25, %c0_26] : memref<56x128xf32, #tpu.memory_space<vmem>>, vector<56x128xf32>
      %44 = vector.broadcast %42 : vector<56x1xf32> to vector<56x128xf32>
      %45 = arith.mulf %43, %44 : vector<56x128xf32>
      %c0_27 = arith.constant 0 : index
      %c0_28 = arith.constant 0 : index
      %46 = vector.load %arg5[%c0_27, %c0_28] : memref<1x128xf32, #tpu.memory_space<vmem>>, vector<1x128xf32>
      %47 = vector.broadcast %46 : vector<1x128xf32> to vector<56x128xf32>
      %48 = arith.addf %45, %47 : vector<56x128xf32>
      %49 = math.tanh %48 : vector<56x128xf32>
      %50 = arith.truncf %49 : vector<56x128xf32> to vector<56x128xbf16>
      %c0_29 = arith.constant 0 : index
      %c0_30 = arith.constant 0 : index
      %51 = vector.load %arg6[%c0_29, %c0_30] : memref<128x128xbf16, #tpu.memory_space<vmem>>, vector<128x128xbf16>
      %cst_31 = arith.constant dense<0.000000e+00> : vector<56x128xf32>
      %52 = tpu.matmul %50, %51, %cst_31 {dimension_numbers = #tpu.dot_dimension_numbers<[1], [0], [0], [1], [0, 0, 1, 1], [], []>} : vector<56x128xbf16>, vector<128x128xbf16>, vector<56x128xf32> -> vector<56x128xf32>
      %c0_32 = arith.constant 0 : index
      %c0_33 = arith.constant 0 : index
      %53 = vector.load %arg7[%c0_32, %c0_33] : memref<1x128xf32, #tpu.memory_space<vmem>>, vector<1x128xf32>
      %54 = vector.broadcast %53 : vector<1x128xf32> to vector<56x128xf32>
      %55 = arith.addf %52, %54 : vector<56x128xf32>
      %56 = tpu.iota {dimensions = array<i32: 1>} : vector<56x128xi32>
      %c64_i32 = arith.constant 64 : i32
      %57 = vector.broadcast %c64_i32 : i32 to vector<56x128xi32>
      %58 = arith.cmpi slt, %56, %57 : vector<56x128xi32>
      %cst_34 = arith.constant 0.000000e+00 : f32
      %59 = vector.broadcast %cst_34 : f32 to vector<56x128xf32>
      %60 = arith.select %58, %55, %59 : vector<56x128xi1>, vector<56x128xf32>
      %61 = arith.mulf %60, %60 : vector<56x128xf32>
      %cst_35 = arith.constant dense<0.000000e+00> : vector<56xf32>
      %62 = vector.multi_reduction <add>, %61, %cst_35 [1] : vector<56x128xf32> to vector<56xf32>
      %63 = vector.shape_cast %62 : vector<56xf32> to vector<56x1xf32>
      %cst_36 = arith.constant 1.000000e-24 : f32
      %64 = vector.broadcast %cst_36 : f32 to vector<56x1xf32>
      %65 = arith.maximumf %63, %64 : vector<56x1xf32>
      %66 = math.rsqrt %65 : vector<56x1xf32>
      %67 = vector.broadcast %66 : vector<56x1xf32> to vector<56x128xf32>
      %68 = arith.mulf %55, %67 : vector<56x128xf32>
      %cst_37 = arith.constant 0.000000e+00 : f32
      %69 = vector.broadcast %cst_37 : f32 to vector<56x128xf32>
      %70 = arith.subf %69, %55 : vector<56x128xf32>
      %71 = arith.select %58, %68, %70 : vector<56x128xi1>, vector<56x128xf32>
      %c0_38 = arith.constant 0 : index
      %c0_39 = arith.constant 0 : index
      %72 = vector.load %arg8[%c0_38, %c0_39] : memref<56x128xf32, #tpu.memory_space<vmem>>, vector<56x128xf32>
      tpu.vector_store %arg8[%c0_38, %c0_39], %71 {strides = array<i32>} : memref<56x128xf32, #tpu.memory_space<vmem>>, vector<56x128xf32>,
    } else {
    }
    return
  }
  func.func @transform_0(%arg0: i32) -> (i32, i32) {
    %c0_i32 = arith.constant 0 : i32
    %c0_i32_0 = arith.constant 0 : i32
    return %c0_i32, %arg0 : i32, i32
  }
  func.func @transform_1(%arg0: i32) -> (i32, i32) {
    %c0_i32 = arith.constant 0 : i32
    %c0_i32_0 = arith.constant 0 : i32
    return %c0_i32, %arg0 : i32, i32
  }
  func.func @transform_2(%arg0: i32) -> (i32, i32) {
    %c0_i32 = arith.constant 0 : i32
    %c0_i32_0 = arith.constant 0 : i32
    %c0_i32_1 = arith.constant 0 : i32
    return %c0_i32, %c0_i32_0 : i32, i32
  }
  func.func @transform_3(%arg0: i32) -> (i32, i32) {
    %c0_i32 = arith.constant 0 : i32
    %c0_i32_0 = arith.constant 0 : i32
    return %arg0, %c0_i32 : i32, i32
  }
  func.func @transform_4(%arg0: i32) -> (i32, i32) {
    %c0_i32 = arith.constant 0 : i32
    %c0_i32_0 = arith.constant 0 : i32
    %c0_i32_1 = arith.constant 0 : i32
    return %c0_i32, %c0_i32_0 : i32, i32
  }
  func.func @transform_5(%arg0: i32) -> (i32, i32) {
    %c0_i32 = arith.constant 0 : i32
    %c0_i32_0 = arith.constant 0 : i32
    %c0_i32_1 = arith.constant 0 : i32
    return %c0_i32, %c0_i32_0 : i32, i32
  }
  func.func @transform_6(%arg0: i32) -> (i32, i32) {
    %c0_i32 = arith.constant 0 : i32
    %c0_i32_0 = arith.constant 0 : i32
    %c0_i32_1 = arith.constant 0 : i32
    return %c0_i32, %c0_i32_0 : i32, i32
  }
  func.func @transform_7(%arg0: i32) -> (i32, i32) {
    %c0_i32 = arith.constant 0 : i32
    %c0_i32_0 = arith.constant 0 : i32
    %c0_i32_1 = arith.constant 0 : i32
    return %c0_i32, %c0_i32_0 : i32, i32
  }
}

</mosaic_0001>

<llo_original>
// kernel: tpu_custom_call.1
$region0: #{tpu_custom_call.1}
  #allocation0 [shape = 'u32[]', space=smem, size = 0x4, offset = 0x4, fixed_abs, tag = 'smem constant byte address 0x4 - core index']
  #allocation1 [shape = 'u32[72,128]{1,0:T(1,128)}', space=vmem, size = 0x9000, scoped, tag = 'internal scratch']
  #allocation2 [shape = 'f32[56,128]{1,0:T(8,128)}', space=vmem, size = 0x7000, scoped, tag = 'scratch operand']
  #allocation3 [shape = 'f32[56,1]{1,0:T(8,128)}', space=vmem, size = 0x7000, scoped, tag = 'scratch operand']
  %s0 = inlined_call_operand.hbm [shape: f32[8,512], index: 0, kind: input, shape index: {}]
  %s1 = inlined_call_operand.hbm [shape: bf16[64,512], index: 1, kind: input, shape index: {}]
  %s2 = inlined_call_operand.hbm [shape: bf16[7,64], index: 2, kind: input, shape index: {}]
  %s3 = inlined_call_operand.hbm [shape: bf16[512,128], index: 3, kind: input, shape index: {}]
  %s4 = inlined_call_operand.vmem [shape: f32[1,128], index: 4, kind: input, shape index: {}]
  %s5 = inlined_call_operand.hbm [shape: bf16[128,128], index: 5, kind: input, shape index: {}]
  %s6 = inlined_call_operand.vmem [shape: f32[1,128], index: 6, kind: input, shape index: {}]
  %s7 = inlined_call_operand.hbm [shape: f32[56,128], index: 7, kind: output, shape index: {}]
  %s8 = sld [smem:[#allocation0]]
  $region89: #{tpu_custom_call.1} parent=0
    _
  %s10 = ssub.s32 1, %s8
  %s11 = scalar_select 0, %s10, %s8
  $region1: #{tpu_custom_call.1} parent=0
    #allocation4 [shape = 'u8[8192]{0}', space=vmem, size = 0x2000, scoped, tag = 'input window, operand 0']
    #allocation5 [shape = 's32[2]{0}', space=sflag, size = 0x8, scoped, tag = 'scoped memory for tpu_custom_call.1']
    #allocation6 [shape = 's32[2]{0}', space=sflag, size = 0x8, scoped, tag = 'scoped memory for tpu_custom_call.1']
    #allocation7 [shape = 'u8[32768]{0}', space=vmem, size = 0x8000, scoped, tag = 'input window, operand 1']
    #allocation8 [shape = 's32[2]{0}', space=sflag, size = 0x8, scoped, tag = 'scoped memory for tpu_custom_call.1']
    #allocation9 [shape = 'u8[2048]{0}', space=vmem, size = 0x800, scoped, tag = 'input window, operand 2, single buffered']
    #allocation10 [shape = 'u8[65536]{0}', space=vmem, size = 0x10000, scoped, tag = 'input window, operand 3']
    #allocation11 [shape = 's32[2]{0}', space=sflag, size = 0x8, scoped, tag = 'scoped memory for tpu_custom_call.1']
    #allocation12 [shape = 'u8[32768]{0}', space=vmem, size = 0x8000, scoped, tag = 'input window, operand 5, single buffered']
    #allocation13 [shape = 'u8[28672]{0}', space=vmem, size = 0x7000, scoped, tag = 'output window, operand 0, single buffered']
    %12 = vsyncpa [#allocation5], 0
    %s13 = scalar_lea.sflag [#allocation5], 1
    %14 = vsyncpa %s13, 0
    %15 = vsyncpa [#allocation8], 0
    %s16 = scalar_lea.sflag [#allocation8], 1
    %17 = vsyncpa %s16, 0
    %18 = vsyncpa [#allocation11], 0
    %s19 = scalar_lea.sflag [#allocation11], 1
    %20 = vsyncpa %s19, 0
    %21 = vsyncpa [#allocation6], 0
    loop: start=0, step=1, limit=6
    $region2: #{tpu_custom_call.1} parent=1 // loop_pre_header
      _
    $region3: #{tpu_custom_call.1} parent=1 // loop_header
      %s23 = sphi 0, %s27
      %p24 = scmp.ge.s32.totalorder %s23, 6
      %s33 = sphi 0, %s35
      %s36 = sphi 0, %s33
      %s37 = sphi 0, %s36
      %s53 = sphi 0, %s37
      %s59 = sphi 0, %s61
      %s62 = sphi 0, %s59
      %s63 = sphi 0, %s62
      %s79 = sphi 0, %s63
      %s83 = sphi 0, %s83
      %s85 = sphi 0, %s83
      %s86 = sphi 0, %s85
      %s100 = sphi 0, %s86
      %s106 = sphi 0, %s108
      %s109 = sphi 0, %s106
      %s110 = sphi 0, %s109
      %s126 = sphi 0, %s110
      %s130 = sphi 0, %s130
      %s132 = sphi 0, %s130
      %s133 = sphi 0, %s132
      %s147 = sphi 0, %s133
      %s151 = sphi 0, %s151
      %s153 = sphi 0, %s151
      %s154 = sphi 0, %s153
      %s168 = sphi 0, %s154
      %s172 = sphi 0, %s172
      %s174 = sphi 0, %s172
      %s175 = sphi 0, %s174
      %s189 = sphi 0, %s175
      %s193 = sphi 0, %s193
      %s195 = sphi 0, %s193
      %s196 = sphi 0, %s195
      %s210 = sphi 0, %s196
    $region4: #{tpu_custom_call.1} parent=1 // loop_header_branch
      %26 = sbr.rel (%p24) target = $region8
    $region5: #{tpu_custom_call.1} parent=1 // loop_body
      %s28 = ssub.s32 %s23, 1
      %s29 = ssub.s32 %s23, 2
      %s30 = sadd.s32 %s23, 1
      %s31 = ssub.s32 %s23, %s30
      %p32 = scmp.eq.s32.totalorder %s31, 0
      %s34 = sadd.s32 %s33, 1
      %s35 = scalar_select %p32, %s33, %s34
      %p38 = pneg %p32
      %p39 = scmp.eq.s32.totalorder %s23, 3
      %p40 = por %p38, %p39
      %p41 = scmp.ne.s32.totalorder %s33, %s36
      %p42 = scmp.eq.s32.totalorder %s23, 0
      %p43 = por %p41, %p42
      %p44 = scmp.ne.s32.totalorder %s33, %s36
      %p45 = scmp.eq.s32.totalorder %s28, 3
      %p46 = por %p44, %p45
      %p47 = scmp.ne.s32.totalorder %s36, %s37
      %p48 = scmp.eq.s32.totalorder %s28, 0
      %p49 = por %p47, %p48
      %p50 = scmp.ne.s32.totalorder %s36, %s37
      %p51 = scmp.eq.s32.totalorder %s29, 3
      %p52 = por %p50, %p51
      %p54 = scmp.ne.s32.totalorder %s37, %s53
      %p55 = scmp.eq.s32.totalorder %s29, 0
      %p56 = por %p54, %p55
      %s57 = ssub.s32 %s23, %s30
      %p58 = scmp.eq.s32.totalorder %s57, 0
      %s60 = sadd.s32 %s59, 1
      %s61 = scalar_select %p58, %s59, %s60
      %p64 = pneg %p58
      %p65 = scmp.eq.s32.totalorder %s23, 3
      %p66 = por %p64, %p65
      %p67 = scmp.ne.s32.totalorder %s59, %s62
      %p68 = scmp.eq.s32.totalorder %s23, 0
      %p69 = por %p67, %p68
      %p70 = scmp.ne.s32.totalorder %s59, %s62
      %p71 = scmp.eq.s32.totalorder %s28, 3
      %p72 = por %p70, %p71
      %p73 = scmp.ne.s32.totalorder %s62, %s63
      %p74 = scmp.eq.s32.totalorder %s28, 0
      %p75 = por %p73, %p74
      %p76 = scmp.ne.s32.totalorder %s62, %s63
      %p77 = scmp.eq.s32.totalorder %s29, 3
      %p78 = por %p76, %p77
      %p80 = scmp.ne.s32.totalorder %s63, %s79
      %p81 = scmp.eq.s32.totalorder %s29, 0
      %p82 = por %p80, %p81
      %s84 = sadd.s32 %s83, 1
      %p87 = scmp.eq.s32.totalorder %s23, 3
      %p88 = scmp.ne.s32.totalorder %s83, %s85
      %p89 = scmp.eq.s32.totalorder %s23, 0
      %p90 = por %p88, %p89
      %p91 = scmp.ne.s32.totalorder %s83, %s85
      %p92 = scmp.eq.s32.totalorder %s28, 3
      %p93 = por %p91, %p92
      %p94 = scmp.ne.s32.totalorder %s85, %s86
      %p95 = scmp.eq.s32.totalorder %s28, 0
      %p96 = por %p94, %p95
      %p97 = scmp.ne.s32.totalorder %s85, %s86
      %p98 = scmp.eq.s32.totalorder %s29, 3
      %p99 = por %p97, %p98
      %p101 = scmp.ne.s32.totalorder %s86, %s100
      %p102 = scmp.eq.s32.totalorder %s29, 0
      %p103 = por %p101, %p102
      %s104 = ssub.s32 %s23, %s30
      %p105 = scmp.eq.s32.totalorder %s104, 0
      %s107 = sadd.s32 %s106, 1
      %s108 = scalar_select %p105, %s106, %s107
      %p111 = pneg %p105
      %p112 = scmp.eq.s32.totalorder %s23, 3
      %p113 = por %p111, %p112
      %p114 = scmp.ne.s32.totalorder %s106, %s109
      %p115 = scmp.eq.s32.totalorder %s23, 0
      %p116 = por %p114, %p115
      %p117 = scmp.ne.s32.totalorder %s106, %s109
      %p118 = scmp.eq.s32.totalorder %s28, 3
      %p119 = por %p117, %p118
      %p120 = scmp.ne.s32.totalorder %s109, %s110
      %p121 = scmp.eq.s32.totalorder %s28, 0
      %p122 = por %p120, %p121
      %p123 = scmp.ne.s32.totalorder %s109, %s110
      %p124 = scmp.eq.s32.totalorder %s29, 3
      %p125 = por %p123, %p124
      %p127 = scmp.ne.s32.totalorder %s110, %s126
      %p128 = scmp.eq.s32.totalorder %s29, 0
      %p129 = por %p127, %p128
      %s131 = sadd.s32 %s130, 1
      %p134 = scmp.eq.s32.totalorder %s23, 3
      %p135 = scmp.ne.s32.totalorder %s130, %s132
      %p136 = scmp.eq.s32.totalorder %s23, 0
      %p137 = por %p135, %p136
      %p138 = scmp.ne.s32.totalorder %s130, %s132
      %p139 = scmp.eq.s32.totalorder %s28, 3
      %p140 = por %p138, %p139
      %p141 = scmp.ne.s32.totalorder %s132, %s133
      %p142 = scmp.eq.s32.totalorder %s28, 0
      %p143 = por %p141, %p142
      %p144 = scmp.ne.s32.totalorder %s132, %s133
      %p145 = scmp.eq.s32.totalorder %s29, 3
      %p146 = por %p144, %p145
      %p148 = scmp.ne.s32.totalorder %s133, %s147
      %p149 = scmp.eq.s32.totalorder %s29, 0
      %p150 = por %p148, %p149
      %s152 = sadd.s32 %s151, 1
      %p155 = scmp.eq.s32.totalorder %s23, 3
      %p156 = scmp.ne.s32.totalorder %s151, %s153
      %p157 = scmp.eq.s32.totalorder %s23, 0
      %p158 = por %p156, %p157
      %p159 = scmp.ne.s32.totalorder %s151, %s153
      %p160 = scmp.eq.s32.totalorder %s28, 3
      %p161 = por %p159, %p160
      %p162 = scmp.ne.s32.totalorder %s153, %s154
      %p163 = scmp.eq.s32.totalorder %s28, 0
      %p164 = por %p162, %p163
      %p165 = scmp.ne.s32.totalorder %s153, %s154
      %p166 = scmp.eq.s32.totalorder %s29, 3
      %p167 = por %p165, %p166
      %p169 = scmp.ne.s32.totalorder %s154, %s168
      %p170 = scmp.eq.s32.totalorder %s29, 0
      %p171 = por %p169, %p170
      %s173 = sadd.s32 %s172, 1
      %p176 = scmp.eq.s32.totalorder %s23, 3
      %p177 = scmp.ne.s32.totalorder %s172, %s174
      %p178 = scmp.eq.s32.totalorder %s23, 0
      %p179 = por %p177, %p178
      %p180 = scmp.ne.s32.totalorder %s172, %s174
      %p181 = scmp.eq.s32.totalorder %s28, 3
      %p182 = por %p180, %p181
      %p183 = scmp.ne.s32.totalorder %s174, %s175
      %p184 = scmp.eq.s32.totalorder %s28, 0
      %p185 = por %p183, %p184
      %p186 = scmp.ne.s32.totalorder %s174, %s175
      %p187 = scmp.eq.s32.totalorder %s29, 3
      %p188 = por %p186, %p187
      %p190 = scmp.ne.s32.totalorder %s175, %s189
      %p191 = scmp.eq.s32.totalorder %s29, 0
      %p192 = por %p190, %p191
      %s194 = sadd.s32 %s193, 1
      %p197 = scmp.eq.s32.totalorder %s23, 3
      %p198 = scmp.ne.s32.totalorder %s193, %s195
      %p199 = scmp.eq.s32.totalorder %s23, 0
      %p200 = por %p198, %p199
      %p201 = scmp.ne.s32.totalorder %s193, %s195
      %p202 = scmp.eq.s32.totalorder %s28, 3
      %p203 = por %p201, %p202
      %p204 = scmp.ne.s32.totalorder %s195, %s196
      %p205 = scmp.eq.s32.totalorder %s28, 0
      %p206 = por %p204, %p205
      %p207 = scmp.ne.s32.totalorder %s195, %s196
      %p208 = scmp.eq.s32.totalorder %s29, 3
      %p209 = por %p207, %p208
      %p211 = scmp.ne.s32.totalorder %s196, %s210
      %p212 = scmp.eq.s32.totalorder %s29, 0
      %p213 = por %p211, %p212
      %p214 = scmp.le.s32.totalorder 1, %s23
      %p215 = scmp.lt.s32.totalorder %s23, 5
      %p216 = pnand %p214, %p215
      %p217 = pneg %p216
      // Predicated region
      $region9: #{tpu_custom_call.1} parent=5 // pred_check
        _
      $region10: #{tpu_custom_call.1} parent=5 // pred_check_branch
        %219 = sbr.rel (%p216) target = $region12
      $region11: #{tpu_custom_call.1} parent=5 // pred_region
        %s220 = ssub.s32 %s23, 1
        // Predicated region
        $region13: #{tpu_custom_call.1} parent=11 // pred_check
          %p221 = pneg %p96
        $region14: #{tpu_custom_call.1} parent=11 // pred_check_branch
          %223 = sbr.rel (%p221) target = $region16
        $region15: #{tpu_custom_call.1} parent=11 // pred_region
          %225 = vsyncadd [#allocation8], 0
          %s227 = sshll.u32 %s2, 4
          %s228 = int_to_ptr.hbm [resolvable:$true] %s227
          %s229 = sshll.u32 [#allocation9], 4
          %s230 = int_to_ptr.vmem [resolvable:$true] %s229
          %232 = dma.hbm_to_vmem [thread:$0]  %s228, 64, %s230, [#allocation8]
        $region16: #{tpu_custom_call.1} parent=11 // pred_fallthru
          _
        // Predicated region
        $region17: #{tpu_custom_call.1} parent=11 // pred_check
          %p233 = pneg %p143
        $region18: #{tpu_custom_call.1} parent=11 // pred_check_branch
          %235 = sbr.rel (%p233) target = $region20
        $region19: #{tpu_custom_call.1} parent=11 // pred_region
          _
        $region20: #{tpu_custom_call.1} parent=11 // pred_fallthru
          _
        // Predicated region
        $region21: #{tpu_custom_call.1} parent=11 // pred_check
          %p236 = pneg %p164
        $region22: #{tpu_custom_call.1} parent=11 // pred_check_branch
          %238 = sbr.rel (%p236) target = $region24
        $region23: #{tpu_custom_call.1} parent=11 // pred_region
          %240 = vsyncadd [#allocation11], 0
          %s241 = sshll.u32 %s5, 4
          %s242 = int_to_ptr.hbm [resolvable:$true] %s241
          %s243 = sshll.u32 [#allocation12], 4
          %s244 = int_to_ptr.vmem [resolvable:$true] %s243
          %249 = dma.hbm_to_vmem [thread:$0]  %s242, 1024, %s244, [#allocation11], 64, 64, 4
        $region24: #{tpu_custom_call.1} parent=11 // pred_fallthru
          _
        // Predicated region
        $region25: #{tpu_custom_call.1} parent=11 // pred_check
          %p250 = pneg %p185
        $region26: #{tpu_custom_call.1} parent=11 // pred_check_branch
          %252 = sbr.rel (%p250) target = $region28
        $region27: #{tpu_custom_call.1} parent=11 // pred_region
          _
        $region28: #{tpu_custom_call.1} parent=11 // pred_fallthru
          _
      $region12: #{tpu_custom_call.1} parent=5 // pred_fallthru
        _
      %p253 = scmp.lt.s32.totalorder %s23, 4
      // Predicated region
      $region29: #{tpu_custom_call.1} parent=5 // pred_check
        %p254 = pneg %p253
      $region30: #{tpu_custom_call.1} parent=5 // pred_check_branch
        %256 = sbr.rel (%p254) target = $region32
      $region31: #{tpu_custom_call.1} parent=5 // pred_region
        // Predicated region
        $region33: #{tpu_custom_call.1} parent=31 // pred_check
          %p257 = pneg %p43
        $region34: #{tpu_custom_call.1} parent=31 // pred_check_branch
          %259 = sbr.rel (%p257) target = $region36
        $region35: #{tpu_custom_call.1} parent=31 // pred_region
          %s260 = sand.u32 %s33, 1
          %s261 = scalar_lea.sflag [#allocation5], %s260
          %s262 = sand.u32 %s33, 1
          %s263 = smul.addr %s262, 8
          %s264 = scalar_lea.vmem [#allocation4], %s263
          %266 = vsyncadd %s261, 0
          %s267 = smul.addr %s23, 8
          %s268 = scalar_lea.hbm %s0, %s267
          %s270 = sshll.u32 %s268, 4
          %s271 = int_to_ptr.hbm [resolvable:$true] %s270
          %s272 = sshll.u32 %s264, 4
          %s273 = int_to_ptr.vmem [resolvable:$true] %s272
          %275 = dma.hbm_to_vmem [thread:$0]  %s271, 128, %s273, %s261
        $region36: #{tpu_custom_call.1} parent=31 // pred_fallthru
          _
        // Predicated region
        $region37: #{tpu_custom_call.1} parent=31 // pred_check
          %p276 = pneg %p69
        $region38: #{tpu_custom_call.1} parent=31 // pred_check_branch
          %278 = sbr.rel (%p276) target = $region40
        $region39: #{tpu_custom_call.1} parent=31 // pred_region
          %s279 = sand.u32 %s23, 1
          %s280 = scalar_lea.sflag [#allocation8], %s279
          %s281 = sand.u32 %s59, 1
          %s282 = smul.addr %s281, 32
          %s283 = scalar_lea.vmem [#allocation7], %s282
          %285 = vsyncadd %s280, 0
          %s286 = smul.addr %s23, 4
          %s287 = scalar_lea.hbm %s1, %s286
          %s288 = sshll.u32 %s287, 4
          %s289 = int_to_ptr.hbm [resolvable:$true] %s288
          %s290 = sshll.u32 %s283, 4
          %s291 = int_to_ptr.vmem [resolvable:$true] %s290
          %296 = dma.hbm_to_vmem [thread:$0]  %s289, 512, %s291, %s280, 256, 64, 4
        $region40: #{tpu_custom_call.1} parent=31 // pred_fallthru
          _
        // Predicated region
        $region41: #{tpu_custom_call.1} parent=31 // pred_check
          %p297 = pneg %p116
        $region42: #{tpu_custom_call.1} parent=31 // pred_check_branch
          %299 = sbr.rel (%p297) target = $region44
        $region43: #{tpu_custom_call.1} parent=31 // pred_region
          %s300 = sand.u32 %s23, 1
          %s301 = scalar_lea.sflag [#allocation11], %s300
          %s302 = sand.u32 %s106, 1
          %s303 = smul.addr %s302, 64
          %s304 = scalar_lea.vmem [#allocation10], %s303
          %s305 = smul.u32 16, %s23
          %307 = vsyncadd %s301, 0
          %s308 = smul.addr %s305, 4
          %s309 = scalar_lea.hbm %s3, %s308
          %s310 = sshll.u32 %s309, 4
          %s311 = int_to_ptr.hbm [resolvable:$true] %s310
          %s312 = sshll.u32 %s304, 4
          %s313 = int_to_ptr.vmem [resolvable:$true] %s312
          %318 = dma.hbm_to_vmem [thread:$0]  %s311, 1024, %s313, %s301, 64, 64, 4
        $region44: #{tpu_custom_call.1} parent=31 // pred_fallthru
          _
      $region32: #{tpu_custom_call.1} parent=5 // pred_fallthru
        _
      %p319 = scmp.le.s32.totalorder 1, %s23
      %p320 = scmp.lt.s32.totalorder %s23, 5
      %p321 = pnand %p319, %p320
      %p322 = pneg %p321
      // Predicated region
      $region45: #{tpu_custom_call.1} parent=5 // pred_check
        _
      $region46: #{tpu_custom_call.1} parent=5 // pred_check_branch
        %324 = sbr.rel (%p321) target = $region48
      $region47: #{tpu_custom_call.1} parent=5 // pred_region
        %s325 = ssub.s32 %s23, 1
        %s326 = sand.u32 %s36, 1
        %s327 = scalar_lea.sflag [#allocation5], %s326
        %s328 = sand.u32 %s36, 1
        %s329 = smul.addr %s328, 8
        %s330 = scalar_lea.vmem [#allocation4], %s329
        // Predicated region
        $region49: #{tpu_custom_call.1} parent=47 // pred_check
          %p331 = pneg %p49
        $region50: #{tpu_custom_call.1} parent=47 // pred_check_branch
          %333 = sbr.rel (%p331) target = $region52
        $region51: #{tpu_custom_call.1} parent=47 // pred_region
          %335 = dma.done %s327, 128
        $region52: #{tpu_custom_call.1} parent=47 // pred_fallthru
          _
        %s336 = sand.u32 %s28, 1
        %s337 = scalar_lea.sflag [#allocation8], %s336
        %s338 = sand.u32 %s62, 1
        %s339 = smul.addr %s338, 32
        %s340 = scalar_lea.vmem [#allocation7], %s339
        // Predicated region
        $region53: #{tpu_custom_call.1} parent=47 // pred_check
          %p341 = pneg %p75
        $region54: #{tpu_custom_call.1} parent=47 // pred_check_branch
          %343 = sbr.rel (%p341) target = $region56
        $region55: #{tpu_custom_call.1} parent=47 // pred_region
          %345 = dma.done %s337, 512
        $region56: #{tpu_custom_call.1} parent=47 // pred_fallthru
          _
        // Predicated region
        $region57: #{tpu_custom_call.1} parent=47 // pred_check
          %p346 = pneg %p96
        $region58: #{tpu_custom_call.1} parent=47 // pred_check_branch
          %348 = sbr.rel (%p346) target = $region60
        $region59: #{tpu_custom_call.1} parent=47 // pred_region
          %350 = dma.done [#allocation8], 64
        $region60: #{tpu_custom_call.1} parent=47 // pred_fallthru
          _
        %s351 = sand.u32 %s28, 1
        %s352 = scalar_lea.sflag [#allocation11], %s351
        %s353 = sand.u32 %s109, 1
        %s354 = smul.addr %s353, 64
        %s355 = scalar_lea.vmem [#allocation10], %s354
        // Predicated region
        $region61: #{tpu_custom_call.1} parent=47 // pred_check
          %p356 = pneg %p122
        $region62: #{tpu_custom_call.1} parent=47 // pred_check_branch
          %358 = sbr.rel (%p356) target = $region64
        $region63: #{tpu_custom_call.1} parent=47 // pred_region
          %360 = dma.done %s352, 1024
        $region64: #{tpu_custom_call.1} parent=47 // pred_fallthru
          _
        // Predicated region
        $region65: #{tpu_custom_call.1} parent=47 // pred_check
          %p361 = pneg %p164
        $region66: #{tpu_custom_call.1} parent=47 // pred_check_branch
          %363 = sbr.rel (%p361) target = $region68
        $region67: #{tpu_custom_call.1} parent=47 // pred_region
          %365 = dma.done [#allocation11], 1024
        $region68: #{tpu_custom_call.1} parent=47 // pred_fallthru
          _
        %s366 = sand.u32 %s36, 1
        %s367 = scalar_lea.sflag [#allocation5], %s366
        %s368 = sand.u32 %s36, 1
        %s369 = smul.addr %s368, 8
        %s370 = scalar_lea.vmem [#allocation4], %s369
        %p371 = pneg %p49
        %p372 = pneg %p46
        %s373 = sand.u32 %s28, 1
        %s374 = scalar_lea.sflag [#allocation8], %s373
        %s375 = sand.u32 %s62, 1
        %s376 = smul.addr %s375, 32
        %s377 = scalar_lea.vmem [#allocation7], %s376
        %p378 = pneg %p75
        %p379 = pneg %p72
        %p380 = pneg %p96
        %p381 = pneg %p93
        %s382 = sand.u32 %s28, 1
        %s383 = scalar_lea.sflag [#allocation11], %s382
        %s384 = sand.u32 %s109, 1
        %s385 = smul.addr %s384, 64
        %s386 = scalar_lea.vmem [#allocation10], %s385
        %p387 = pneg %p122
        %p388 = pneg %p119
        %p389 = pneg %p143
        %p390 = pneg %p140
        %p391 = pneg %p164
        %p392 = pneg %p161
        %p393 = pneg %p185
        %p394 = pneg %p182
        %p395 = pneg %p206
        %p396 = pneg %p203
        %s397 = smul.u32 16, %s28
        %p399 = scmp.eq.s32.totalorder %s28, 0
        // Predicated region
        $region69: #{tpu_custom_call.1} parent=47 // pred_check
          %p400 = pneg %p399
        $region70: #{tpu_custom_call.1} parent=47 // pred_check_branch
          %402 = sbr.rel (%p400) target = $region72
        $region71: #{tpu_custom_call.1} parent=47 // pred_region
          %403 = vst [vmem:[#allocation2] sm:$0xff] 0.0
          %404 = vst [vmem:[#allocation2 + $0x8] sm:$0xff] 0.0
          %405 = vst [vmem:[#allocation2 + $0x10] sm:$0xff] 0.0
          %406 = vst [vmem:[#allocation2 + $0x18] sm:$0xff] 0.0
          %407 = vst [vmem:[#allocation2 + $0x20] sm:$0xff] 0.0
          %408 = vst [vmem:[#allocation2 + $0x28] sm:$0xff] 0.0
          %409 = vst [vmem:[#allocation2 + $0x30] sm:$0xff] 0.0
          %vm410 = vcmask 7168
          %411 = vst.msk [vmem:[#allocation3] sm:$0xff] %vm410, 0.0
          %412 = vst.msk [vmem:[#allocation3 + $0x8] sm:$0xff] %vm410, 0.0
          %413 = vst.msk [vmem:[#allocation3 + $0x10] sm:$0xff] %vm410, 0.0
          %414 = vst.msk [vmem:[#allocation3 + $0x18] sm:$0xff] %vm410, 0.0
          %415 = vst.msk [vmem:[#allocation3 + $0x20] sm:$0xff] %vm410, 0.0
          %416 = vst.msk [vmem:[#allocation3 + $0x28] sm:$0xff] %vm410, 0.0
          %417 = vst.msk [vmem:[#allocation3 + $0x30] sm:$0xff] %vm410, 0.0
        $region72: #{tpu_custom_call.1} parent=47 // pred_fallthru
          _
        %v418 = vld [vmem:[%s340] sm:$0xf]
        %v419 = vld [vmem:[%s340 + $0x4] sm:$0xf]
        %v420 = vld [vmem:[%s340 + $0x8] sm:$0xf]
        %v421 = vld [vmem:[%s340 + $0xc] sm:$0xf]
        %v422 = vld [vmem:[%s340 + $0x10] sm:$0xf]
        %v423 = vld [vmem:[%s340 + $0x14] sm:$0xf]
        %v424 = vld [vmem:[%s340 + $0x18] sm:$0xf]
        %v425 = vld [vmem:[%s340 + $0x1c] sm:$0xf]
        %v426 = vld [vmem:[#allocation9] sm:$0xf]
        %v435 = vunpack.c.l.b16 %v418
        %v436 = vunpack.c.l.b16 %v419
        %v437 = vunpack.c.l.b16 %v420
        %v438 = vunpack.c.l.b16 %v421
        %v439 = vunpack.c.l.b16 %v422
        %v440 = vunpack.c.l.b16 %v423
        %v441 = vunpack.c.l.b16 %v424
        %v442 = vunpack.c.l.b16 %v425
        %v443 = vpack.c.b16 %v436, %v435
        %v444 = vpack.c.b16 %v438, %v437
        %v445 = vpack.c.b16 %v440, %v439
        %v446 = vpack.c.b16 %v442, %v441
        %vm451 = vcmask 523264
        %v453 = vsel %vm451, %v426, 0
        %455 = vmatpush.bf16.msra.mxu0 0
        %456 = vmatpush.bf16.msra.mxu0 0
        %457 = vmatpush.bf16.msra.mxu0 0
        %458 = vmatpush.bf16.msra.mxu0 0
        %459 = vmatpush.bf16.msra.mxu0 %v446
        %460 = vmatpush.bf16.msra.mxu0 %v445
        %461 = vmatpush.bf16.msra.mxu0 %v444
        %462 = vmatpush.bf16.msra.mxu0 %v443
        %463 = vmatmul.bf16.gmra.mxu0 %v453
        %v464 = vpop.f32.mrf.mxu0
        %v465 = vadd.f32 0.0, %v464
        %v466 = vpop.f32.mrf.mxu0
        %467 = vdwg.mxu0
        %v468 = vmul.f32 %v465, 10.0
        %vm469 = vcmask 1046528
        %v470 = vsel %vm469, %v468, -inf
        %v471 = vrot.slane %v470, 4
        %v472 = vmax.f32 %v470, %v471
        %v473 = vrot.slane %v472, 2
        %v474 = vmax.f32 %v472, %v473
        %v475 = vrot.slane %v474, 1
        %v476 = vmax.f32 %v474, %v475
        %v477 = vsub.f32 %v468, %v476
        %v478 = vmul.f32 %v477, 1.442695
        %v479 = vpow.pop %v478
        %v480 = vsel %vm469, %v479, 0.0
        %v481 = vrot.slane %v480, 4
        %v482 = vadd.f32 %v480, %v481
        %v483 = vrot.slane %v482, 2
        %v484 = vadd.f32 %v482, %v483
        %v485 = vrot.slane %v484, 1
        %v486 = vadd.f32 %v484, %v485
        %v487 = vrcp.pop %v486
        %v488 = vmul.f32 %v486, %v487
        %v489 = vsub.f32 1.0, %v488
        %v490 = vmul.f32 %v487, %v489
        %v491 = vadd.f32 %v487, %v490
        %vm492 = vweird.f32 %v486
        %vm493 = vweird.f32 %v487
        %vm494 = vmor %vm492, %vm493
        %v495 = vsel %vm494, %v487, %v491
        %v496 = vand.u32 2147483647, %v486
        %vm497 = vcmp.eq.f32.partialorder %v496, 8.507059e+37
        %v498 = vand.u32 %v486, 2147483648
        %v499 = vor.u32 1.1754944e-38, %v498
        %v500 = vsel %vm497, %v499, %v495
        %v501 = vmul.f32 %v479, %v500
        %v502 = vld [vmem:[%s330] sm:$0xff]
        %v504 = vrot.slane %v501, 1
        %v505 = vrot.slane %v501, 2
        %v506 = vrot.slane %v501, 3
        %v507 = vrot.slane %v501, 4
        %v508 = vrot.slane %v501, 5
        %v509 = vrot.slane %v501, 6
        %v510 = vperm.slane %v501, 0
        %v511 = vperm.slane %v504, 0
        %v512 = vperm.slane %v505, 0
        %v513 = vperm.slane %v506, 0
        %v514 = vperm.slane %v507, 0
        %v515 = vperm.slane %v508, 0
        %v516 = vperm.slane %v509, 0
        %v524 = vmul.f32 %v502, %v510
        %v525 = vmul.f32 %v502, %v511
        %v526 = vmul.f32 %v502, %v512
        %v527 = vmul.f32 %v502, %v513
        %v528 = vmul.f32 %v502, %v514
        %v529 = vmul.f32 %v502, %v515
        %v530 = vmul.f32 %v502, %v516
        %v531 = vld [vmem:[#allocation3] sm:$0xff]
        %v532 = vld [vmem:[#allocation3 + $0x8] sm:$0xff]
        %v533 = vld [vmem:[#allocation3 + $0x10] sm:$0xff]
        %v534 = vld [vmem:[#allocation3 + $0x18] sm:$0xff]
        %v535 = vld [vmem:[#allocation3 + $0x20] sm:$0xff]
        %v536 = vld [vmem:[#allocation3 + $0x28] sm:$0xff]
        %v537 = vld [vmem:[#allocation3 + $0x30] sm:$0xff]
        %v538 = vmul.f32 %v524, %v524
        %v539 = vmul.f32 %v525, %v525
        %v540 = vmul.f32 %v526, %v526
        %v541 = vmul.f32 %v527, %v527
        %v542 = vmul.f32 %v528, %v528
        %v543 = vmul.f32 %v529, %v529
        %v544 = vmul.f32 %v530, %v530
        %545 = vadd.xlane.f32.xlu0 %v538
        %v546 = vpop.xlane.xlu0 %545
        %547 = vadd.xlane.f32.xlu0 %v539
        %v548 = vpop.xlane.xlu0 %547
        %549 = vadd.xlane.f32.xlu0 %v540
        %v550 = vpop.xlane.xlu0 %549
        %551 = vadd.xlane.f32.xlu0 %v541
        %v552 = vpop.xlane.xlu0 %551
        %553 = vadd.xlane.f32.xlu0 %v542
        %v554 = vpop.xlane.xlu0 %553
        %555 = vadd.xlane.f32.xlu0 %v543
        %v556 = vpop.xlane.xlu0 %555
        %557 = vadd.xlane.f32.xlu0 %v544
        %v558 = vpop.xlane.xlu0 %557
        %v559 = vadd.f32 %v531, %v546
        %v560 = vadd.f32 %v532, %v548
        %v561 = vadd.f32 %v533, %v550
        %v562 = vadd.f32 %v534, %v552
        %v563 = vadd.f32 %v535, %v554
        %v564 = vadd.f32 %v536, %v556
        %v565 = vadd.f32 %v537, %v558
        %vm566 = vcmask 7168
        %567 = vst.msk [vmem:[#allocation3] sm:$0xff] %vm566, %v559
        %568 = vst.msk [vmem:[#allocation3 + $0x8] sm:$0xff] %vm566, %v560
        %569 = vst.msk [vmem:[#allocation3 + $0x10] sm:$0xff] %vm566, %v561
        %570 = vst.msk [vmem:[#allocation3 + $0x18] sm:$0xff] %vm566, %v562
        %571 = vst.msk [vmem:[#allocation3 + $0x20] sm:$0xff] %vm566, %v563
        %572 = vst.msk [vmem:[#allocation3 + $0x28] sm:$0xff] %vm566, %v564
        %573 = vst.msk [vmem:[#allocation3 + $0x30] sm:$0xff] %vm566, %v565
        %v574 = vld [vmem:[#allocation2] sm:$0xff]
        %v575 = vld [vmem:[#allocation2 + $0x8] sm:$0xff]
        %v576 = vld [vmem:[#allocation2 + $0x10] sm:$0xff]
        %v577 = vld [vmem:[#allocation2 + $0x18] sm:$0xff]
        %v578 = vld [vmem:[#allocation2 + $0x20] sm:$0xff]
        %v579 = vld [vmem:[#allocation2 + $0x28] sm:$0xff]
        %v580 = vld [vmem:[#allocation2 + $0x30] sm:$0xff]
        %v581 = vpack.c.bf16 %v525, %v524
        %v582 = vpack.c.bf16 %v527, %v526
        %v583 = vpack.c.bf16 %v529, %v528
        %v584 = vpack.c.bf16 %v530, %v530
        %v585 = vld [vmem:[%s355] sm:$0xf]
        %v586 = vld [vmem:[%s355 + $0x4] sm:$0xf]
        %v587 = vld [vmem:[%s355 + $0x8] sm:$0xf]
        %v588 = vld [vmem:[%s355 + $0xc] sm:$0xf]
        %v589 = vld [vmem:[%s355 + $0x10] sm:$0xf]
        %v590 = vld [vmem:[%s355 + $0x14] sm:$0xf]
        %v591 = vld [vmem:[%s355 + $0x18] sm:$0xf]
        %v592 = vld [vmem:[%s355 + $0x1c] sm:$0xf]
        %v593 = vld [vmem:[%s355 + $0x20] sm:$0xf]
        %v594 = vld [vmem:[%s355 + $0x24] sm:$0xf]
        %v595 = vld [vmem:[%s355 + $0x28] sm:$0xf]
        %v596 = vld [vmem:[%s355 + $0x2c] sm:$0xf]
        %v597 = vld [vmem:[%s355 + $0x30] sm:$0xf]
        %v598 = vld [vmem:[%s355 + $0x34] sm:$0xf]
        %v599 = vld [vmem:[%s355 + $0x38] sm:$0xf]
        %v600 = vld [vmem:[%s355 + $0x3c] sm:$0xf]
        %v617 = vunpack.c.l.b16 %v585
        %v618 = vunpack.c.l.b16 %v586
        %v619 = vunpack.c.l.b16 %v587
        %v620 = vunpack.c.l.b16 %v588
        %v621 = vunpack.c.l.b16 %v589
        %v622 = vunpack.c.l.b16 %v590
        %v623 = vunpack.c.l.b16 %v591
        %v624 = vunpack.c.l.b16 %v592
        %v625 = vunpack.c.l.b16 %v593
        %v626 = vunpack.c.l.b16 %v594
        %v627 = vunpack.c.l.b16 %v595
        %v628 = vunpack.c.l.b16 %v596
        %v629 = vunpack.c.l.b16 %v597
        %v630 = vunpack.c.l.b16 %v598
        %v631 = vunpack.c.l.b16 %v599
        %v632 = vunpack.c.l.b16 %v600
        %v633 = vpack.c.b16 %v618, %v617
        %v634 = vpack.c.b16 %v620, %v619
        %v635 = vpack.c.b16 %v622, %v621
        %v636 = vpack.c.b16 %v624, %v623
        %v637 = vpack.c.b16 %v626, %v625
        %v638 = vpack.c.b16 %v628, %v627
        %v639 = vpack.c.b16 %v630, %v629
        %v640 = vpack.c.b16 %v632, %v631
        %649 = vmatpush.bf16.msra.mxu0 %v640
        %650 = vmatpush.bf16.msra.mxu0 %v639
        %651 = vmatpush.bf16.msra.mxu0 %v638
        %652 = vmatpush.bf16.msra.mxu0 %v637
        %653 = vmatpush.bf16.msra.mxu0 %v636
        %654 = vmatpush.bf16.msra.mxu0 %v635
        %655 = vmatpush.bf16.msra.mxu0 %v634
        %656 = vmatpush.bf16.msra.mxu0 %v633
        %657 = vmatmul.bf16.gmra.mxu0 %v581
        %v658 = vpop.f32.mrf.mxu0
        %v659 = vadd.f32 0.0, %v658
        %v660 = vpop.f32.mrf.mxu0
        %v661 = vadd.f32 0.0, %v660
        %662 = vmatmul.bf16.gmra.mxu0 %v582
        %v663 = vpop.f32.mrf.mxu0
        %v664 = vadd.f32 0.0, %v663
        %v665 = vpop.f32.mrf.mxu0
        %v666 = vadd.f32 0.0, %v665
        %667 = vmatmul.bf16.gmra.mxu0 %v583
        %v668 = vpop.f32.mrf.mxu0
        %v669 = vadd.f32 0.0, %v668
        %v670 = vpop.f32.mrf.mxu0
        %v671 = vadd.f32 0.0, %v670
        %672 = vmatmul.bf16.gmra.mxu0 %v584
        %v673 = vpop.f32.mrf.mxu0
        %v674 = vadd.f32 0.0, %v673
        %v675 = vpop.f32.mrf.mxu0
        %676 = vdwg.mxu0
        %v677 = vadd.f32 %v574, %v659
        %v678 = vadd.f32 %v575, %v661
        %v679 = vadd.f32 %v576, %v664
        %v680 = vadd.f32 %v577, %v666
        %v681 = vadd.f32 %v578, %v669
        %v682 = vadd.f32 %v579, %v671
        %v683 = vadd.f32 %v580, %v674
        %684 = vst [vmem:[#allocation2] sm:$0xff] %v677
        %685 = vst [vmem:[#allocation2 + $0x8] sm:$0xff] %v678
        %686 = vst [vmem:[#allocation2 + $0x10] sm:$0xff] %v679
        %687 = vst [vmem:[#allocation2 + $0x18] sm:$0xff] %v680
        %688 = vst [vmem:[#allocation2 + $0x20] sm:$0xff] %v681
        %689 = vst [vmem:[#allocation2 + $0x28] sm:$0xff] %v682
        %690 = vst [vmem:[#allocation2 + $0x30] sm:$0xff] %v683
        %p691 = scmp.eq.s32.totalorder %s28, 3
        // Predicated region
        $region73: #{tpu_custom_call.1} parent=47 // pred_check
          %p692 = pneg %p691
        $region74: #{tpu_custom_call.1} parent=47 // pred_check_branch
          %694 = sbr.rel (%p692) target = $region76
        $region75: #{tpu_custom_call.1} parent=47 // pred_region
          %v695 = vld [vmem:[#allocation3] sm:$0xff]
          %v696 = vld [vmem:[#allocation3 + $0x8] sm:$0xff]
          %v697 = vld [vmem:[#allocation3 + $0x10] sm:$0xff]
          %v698 = vld [vmem:[#allocation3 + $0x18] sm:$0xff]
          %v699 = vld [vmem:[#allocation3 + $0x20] sm:$0xff]
          %v700 = vld [vmem:[#allocation3 + $0x28] sm:$0xff]
          %v701 = vld [vmem:[#allocation3 + $0x30] sm:$0xff]
          %v702 = vmax.f32 %v695, 1e-24
          %v703 = vmax.f32 %v696, 1e-24
          %v704 = vmax.f32 %v697, 1e-24
          %v705 = vmax.f32 %v698, 1e-24
          %v706 = vmax.f32 %v699, 1e-24
          %v707 = vmax.f32 %v700, 1e-24
          %v708 = vmax.f32 %v701, 1e-24
          %v709 = vrsqrt.pop %v702
          %v710 = vmul.f32 %v709, %v702
          %v711 = vmul.f32 %v710, %v709
          %v712 = vmul.f32 0.5, %v711
          %v713 = vsub.f32 1.5, %v712
          %v714 = vmul.f32 %v709, %v713
          %vm715 = vweird.f32 %v702
          %vm716 = vweird.f32 %v709
          %vm717 = vmor %vm715, %vm716
          %v718 = vsel %vm717, %v709, %v714
          %v719 = vrsqrt.pop %v703
          %v720 = vmul.f32 %v719, %v703
          %v721 = vmul.f32 %v720, %v719
          %v722 = vmul.f32 0.5, %v721
          %v723 = vsub.f32 1.5, %v722
          %v724 = vmul.f32 %v719, %v723
          %vm725 = vweird.f32 %v703
          %vm726 = vweird.f32 %v719
          %vm727 = vmor %vm725, %vm726
          %v728 = vsel %vm727, %v719, %v724
          %v729 = vrsqrt.pop %v704
          %v730 = vmul.f32 %v729, %v704
          %v731 = vmul.f32 %v730, %v729
          %v732 = vmul.f32 0.5, %v731
          %v733 = vsub.f32 1.5, %v732
          %v734 = vmul.f32 %v729, %v733
          %vm735 = vweird.f32 %v704
          %vm736 = vweird.f32 %v729
          %vm737 = vmor %vm735, %vm736
          %v738 = vsel %vm737, %v729, %v734
          %v739 = vrsqrt.pop %v705
          %v740 = vmul.f32 %v739, %v705
          %v741 = vmul.f32 %v740, %v739
          %v742 = vmul.f32 0.5, %v741
          %v743 = vsub.f32 1.5, %v742
          %v744 = vmul.f32 %v739, %v743
          %vm745 = vweird.f32 %v705
          %vm746 = vweird.f32 %v739
          %vm747 = vmor %vm745, %vm746
          %v748 = vsel %vm747, %v739, %v744
          %v749 = vrsqrt.pop %v706
          %v750 = vmul.f32 %v749, %v706
          %v751 = vmul.f32 %v750, %v749
          %v752 = vmul.f32 0.5, %v751
          %v753 = vsub.f32 1.5, %v752
          %v754 = vmul.f32 %v749, %v753
          %vm755 = vweird.f32 %v706
          %vm756 = vweird.f32 %v749
          %vm757 = vmor %vm755, %vm756
          %v758 = vsel %vm757, %v749, %v754
          %v759 = vrsqrt.pop %v707
          %v760 = vmul.f32 %v759, %v707
          %v761 = vmul.f32 %v760, %v759
          %v762 = vmul.f32 0.5, %v761
          %v763 = vsub.f32 1.5, %v762
          %v764 = vmul.f32 %v759, %v763
          %vm765 = vweird.f32 %v707
          %vm766 = vweird.f32 %v759
          %vm767 = vmor %vm765, %vm766
          %v768 = vsel %vm767, %v759, %v764
          %v769 = vrsqrt.pop %v708
          %v770 = vmul.f32 %v769, %v708
          %v771 = vmul.f32 %v770, %v769
          %v772 = vmul.f32 0.5, %v771
          %v773 = vsub.f32 1.5, %v772
          %v774 = vmul.f32 %v769, %v773
          %vm775 = vweird.f32 %v708
          %vm776 = vweird.f32 %v769
          %vm777 = vmor %vm775, %vm776
          %v778 = vsel %vm777, %v769, %v774
          %v779 = vld [vmem:[#allocation2] sm:$0xff]
          %v780 = vld [vmem:[#allocation2 + $0x8] sm:$0xff]
          %v781 = vld [vmem:[#allocation2 + $0x10] sm:$0xff]
          %v782 = vld [vmem:[#allocation2 + $0x18] sm:$0xff]
          %v783 = vld [vmem:[#allocation2 + $0x20] sm:$0xff]
          %v784 = vld [vmem:[#allocation2 + $0x28] sm:$0xff]
          %v785 = vld [vmem:[#allocation2 + $0x30] sm:$0xff]
          %787 = vset.pattern.permute.xlu0 0
          %788 = vperm.xlu0 %787, %v718
          %v789 = vpop.permute.xlu0 %788
          %792 = vset.pattern.permute.xlu0 0
          %793 = vperm.xlu0 %792, %v728
          %v794 = vpop.permute.xlu0 %793
          %797 = vset.pattern.permute.xlu0 0
          %798 = vperm.xlu0 %797, %v738
          %v799 = vpop.permute.xlu0 %798
          %802 = vset.pattern.permute.xlu0 0
          %803 = vperm.xlu0 %802, %v748
          %v804 = vpop.permute.xlu0 %803
          %807 = vset.pattern.permute.xlu0 0
          %808 = vperm.xlu0 %807, %v758
          %v809 = vpop.permute.xlu0 %808
          %812 = vset.pattern.permute.xlu0 0
          %813 = vperm.xlu0 %812, %v768
          %v814 = vpop.permute.xlu0 %813
          %817 = vset.pattern.permute.xlu0 0
          %818 = vperm.xlu0 %817, %v778
          %v819 = vpop.permute.xlu0 %818
          %v821 = vmul.f32 %v779, %v789
          %v822 = vmul.f32 %v780, %v794
          %v823 = vmul.f32 %v781, %v799
          %v824 = vmul.f32 %v782, %v804
          %v825 = vmul.f32 %v783, %v809
          %v826 = vmul.f32 %v784, %v814
          %v827 = vmul.f32 %v785, %v819
          %v828 = vld [vmem:[%s4] sm:$0x1]
          %v830 = vperm.slane %v828, 0
          %v832 = vadd.f32 %v821, %v830
          %v833 = vadd.f32 %v822, %v830
          %v834 = vadd.f32 %v823, %v830
          %v835 = vadd.f32 %v824, %v830
          %v836 = vadd.f32 %v825, %v830
          %v837 = vadd.f32 %v826, %v830
          %v838 = vadd.f32 %v827, %v830
          %v839 = vtanh.pop %v832
          %v840 = vtanh.pop %v833
          %v841 = vtanh.pop %v834
          %v842 = vtanh.pop %v835
          %v843 = vtanh.pop %v836
          %v844 = vtanh.pop %v837
          %v845 = vtanh.pop %v838
          %v846 = vpack.c.bf16 %v840, %v839
          %v847 = vpack.c.bf16 %v842, %v841
          %v848 = vpack.c.bf16 %v844, %v843
          %v849 = vpack.c.bf16 %v845, %v845
          %v850 = vld [vmem:[#allocation12] sm:$0xf]
          %v851 = vld [vmem:[#allocation12 + $0x4] sm:$0xf]
          %v852 = vld [vmem:[#allocation12 + $0x8] sm:$0xf]
          %v853 = vld [vmem:[#allocation12 + $0xc] sm:$0xf]
          %v854 = vld [vmem:[#allocation12 + $0x10] sm:$0xf]
          %v855 = vld [vmem:[#allocation12 + $0x14] sm:$0xf]
          %v856 = vld [vmem:[#allocation12 + $0x18] sm:$0xf]
          %v857 = vld [vmem:[#allocation12 + $0x1c] sm:$0xf]
          %v858 = vld [vmem:[#allocation12 + $0x20] sm:$0xf]
          %v859 = vld [vmem:[#allocation12 + $0x24] sm:$0xf]
          %v860 = vld [vmem:[#allocation12 + $0x28] sm:$0xf]
          %v861 = vld [vmem:[#allocation12 + $0x2c] sm:$0xf]
          %v862 = vld [vmem:[#allocation12 + $0x30] sm:$0xf]
          %v863 = vld [vmem:[#allocation12 + $0x34] sm:$0xf]
          %v864 = vld [vmem:[#allocation12 + $0x38] sm:$0xf]
          %v865 = vld [vmem:[#allocation12 + $0x3c] sm:$0xf]
          %v866 = vld [vmem:[%s6] sm:$0x1]
          %v868 = vperm.slane %v866, 0
          %v886 = vunpack.c.l.b16 %v850
          %v887 = vunpack.c.l.b16 %v851
          %v888 = vunpack.c.l.b16 %v852
          %v889 = vunpack.c.l.b16 %v853
          %v890 = vunpack.c.l.b16 %v854
          %v891 = vunpack.c.l.b16 %v855
          %v892 = vunpack.c.l.b16 %v856
          %v893 = vunpack.c.l.b16 %v857
          %v894 = vunpack.c.l.b16 %v858
          %v895 = vunpack.c.l.b16 %v859
          %v896 = vunpack.c.l.b16 %v860
          %v897 = vunpack.c.l.b16 %v861
          %v898 = vunpack.c.l.b16 %v862
          %v899 = vunpack.c.l.b16 %v863
          %v900 = vunpack.c.l.b16 %v864
          %v901 = vunpack.c.l.b16 %v865
          %v902 = vpack.c.b16 %v887, %v886
          %v903 = vpack.c.b16 %v889, %v888
          %v904 = vpack.c.b16 %v891, %v890
          %v905 = vpack.c.b16 %v893, %v892
          %v906 = vpack.c.b16 %v895, %v894
          %v907 = vpack.c.b16 %v897, %v896
          %v908 = vpack.c.b16 %v899, %v898
          %v909 = vpack.c.b16 %v901, %v900
          %918 = vmatpush.bf16.msra.mxu0 %v909
          %919 = vmatpush.bf16.msra.mxu0 %v908
          %920 = vmatpush.bf16.msra.mxu0 %v907
          %921 = vmatpush.bf16.msra.mxu0 %v906
          %922 = vmatpush.bf16.msra.mxu0 %v905
          %923 = vmatpush.bf16.msra.mxu0 %v904
          %924 = vmatpush.bf16.msra.mxu0 %v903
          %925 = vmatpush.bf16.msra.mxu0 %v902
          %926 = vmatmul.bf16.gmra.mxu0 %v846
          %v927 = vpop.f32.mrf.mxu0
          %v928 = vadd.f32 %v868, %v927
          %v929 = vpop.f32.mrf.mxu0
          %v930 = vadd.f32 %v868, %v929
          %931 = vmatmul.bf16.gmra.mxu0 %v847
          %v932 = vpop.f32.mrf.mxu0
          %v933 = vadd.f32 %v868, %v932
          %v934 = vpop.f32.mrf.mxu0
          %v935 = vadd.f32 %v868, %v934
          %936 = vmatmul.bf16.gmra.mxu0 %v848
          %v937 = vpop.f32.mrf.mxu0
          %v938 = vadd.f32 %v868, %v937
          %v939 = vpop.f32.mrf.mxu0
          %v940 = vadd.f32 %v868, %v939
          %941 = vmatmul.bf16.gmra.mxu0 %v849
          %v942 = vpop.f32.mrf.mxu0
          %v943 = vadd.f32 %v868, %v942
          %v944 = vpop.f32.mrf.mxu0
          %945 = vdwg.mxu0
          %v946 = vlaneseq
          %v947 = vand.u32 %v946, 127
          %vm948 = vcmp.lt.s32.totalorder %v947, 64
          %v949 = vsel %vm948, %v928, 0.0
          %v950 = vsel %vm948, %v930, 0.0
          %v951 = vsel %vm948, %v933, 0.0
          %v952 = vsel %vm948, %v935, 0.0
          %v953 = vsel %vm948, %v938, 0.0
          %v954 = vsel %vm948, %v940, 0.0
          %v955 = vsel %vm948, %v943, 0.0
          %v956 = vmul.f32 %v949, %v949
          %v957 = vmul.f32 %v950, %v950
          %v958 = vmul.f32 %v951, %v951
          %v959 = vmul.f32 %v952, %v952
          %v960 = vmul.f32 %v953, %v953
          %v961 = vmul.f32 %v954, %v954
          %v962 = vmul.f32 %v955, %v955
          %963 = vadd.xlane.f32.xlu0 %v956
          %v964 = vpop.xlane.xlu0 %963
          %965 = vadd.xlane.f32.xlu0 %v957
          %v966 = vpop.xlane.xlu0 %965
          %967 = vadd.xlane.f32.xlu0 %v958
          %v968 = vpop.xlane.xlu0 %967
          %969 = vadd.xlane.f32.xlu0 %v959
          %v970 = vpop.xlane.xlu0 %969
          %971 = vadd.xlane.f32.xlu0 %v960
          %v972 = vpop.xlane.xlu0 %971
          %973 = vadd.xlane.f32.xlu0 %v961
          %v974 = vpop.xlane.xlu0 %973
          %975 = vadd.xlane.f32.xlu0 %v962
          %v976 = vpop.xlane.xlu0 %975
          %v977 = vmax.f32 %v964, 1e-24
          %v978 = vmax.f32 %v966, 1e-24
          %v979 = vmax.f32 %v968, 1e-24
          %v980 = vmax.f32 %v970, 1e-24
          %v981 = vmax.f32 %v972, 1e-24
          %v982 = vmax.f32 %v974, 1e-24
          %v983 = vmax.f32 %v976, 1e-24
          %v984 = vrsqrt.pop %v977
          %v985 = vmul.f32 %v984, %v977
          %v986 = vmul.f32 %v985, %v984
          %v987 = vmul.f32 0.5, %v986
          %v988 = vsub.f32 1.5, %v987
          %v989 = vmul.f32 %v984, %v988
          %vm990 = vweird.f32 %v977
          %vm991 = vweird.f32 %v984
          %vm992 = vmor %vm990, %vm991
          %v993 = vsel %vm992, %v984, %v989
          %v994 = vrsqrt.pop %v978
          %v995 = vmul.f32 %v994, %v978
          %v996 = vmul.f32 %v995, %v994
          %v997 = vmul.f32 0.5, %v996
          %v998 = vsub.f32 1.5, %v997
          %v999 = vmul.f32 %v994, %v998
          %vm1000 = vweird.f32 %v978
          %vm1001 = vweird.f32 %v994
          %vm1002 = vmor %vm1000, %vm1001
          %v1003 = vsel %vm1002, %v994, %v999
          %v1004 = vrsqrt.pop %v979
          %v1005 = vmul.f32 %v1004, %v979
          %v1006 = vmul.f32 %v1005, %v1004
          %v1007 = vmul.f32 0.5, %v1006
          %v1008 = vsub.f32 1.5, %v1007
          %v1009 = vmul.f32 %v1004, %v1008
          %vm1010 = vweird.f32 %v979
          %vm1011 = vweird.f32 %v1004
          %vm1012 = vmor %vm1010, %vm1011
          %v1013 = vsel %vm1012, %v1004, %v1009
          %v1014 = vrsqrt.pop %v980
          %v1015 = vmul.f32 %v1014, %v980
          %v1016 = vmul.f32 %v1015, %v1014
          %v1017 = vmul.f32 0.5, %v1016
          %v1018 = vsub.f32 1.5, %v1017
          %v1019 = vmul.f32 %v1014, %v1018
          %vm1020 = vweird.f32 %v980
          %vm1021 = vweird.f32 %v1014
          %vm1022 = vmor %vm1020, %vm1021
          %v1023 = vsel %vm1022, %v1014, %v1019
          %v1024 = vrsqrt.pop %v981
          %v1025 = vmul.f32 %v1024, %v981
          %v1026 = vmul.f32 %v1025, %v1024
          %v1027 = vmul.f32 0.5, %v1026
          %v1028 = vsub.f32 1.5, %v1027
          %v1029 = vmul.f32 %v1024, %v1028
          %vm1030 = vweird.f32 %v981
          %vm1031 = vweird.f32 %v1024
          %vm1032 = vmor %vm1030, %vm1031
          %v1033 = vsel %vm1032, %v1024, %v1029
          %v1034 = vrsqrt.pop %v982
          %v1035 = vmul.f32 %v1034, %v982
          %v1036 = vmul.f32 %v1035, %v1034
          %v1037 = vmul.f32 0.5, %v1036
          %v1038 = vsub.f32 1.5, %v1037
          %v1039 = vmul.f32 %v1034, %v1038
          %vm1040 = vweird.f32 %v982
          %vm1041 = vweird.f32 %v1034
          %vm1042 = vmor %vm1040, %vm1041
          %v1043 = vsel %vm1042, %v1034, %v1039
          %v1044 = vrsqrt.pop %v983
          %v1045 = vmul.f32 %v1044, %v983
          %v1046 = vmul.f32 %v1045, %v1044
          %v1047 = vmul.f32 0.5, %v1046
          %v1048 = vsub.f32 1.5, %v1047
          %v1049 = vmul.f32 %v1044, %v1048
          %vm1050 = vweird.f32 %v983
          %vm1051 = vweird.f32 %v1044
          %vm1052 = vmor %vm1050, %vm1051
          %v1053 = vsel %vm1052, %v1044, %v1049
          %v1054 = vmul.f32 %v928, %v993
          %v1055 = vmul.f32 %v930, %v1003
          %v1056 = vmul.f32 %v933, %v1013
          %v1057 = vmul.f32 %v935, %v1023
          %v1058 = vmul.f32 %v938, %v1033
          %v1059 = vmul.f32 %v940, %v1043
          %v1060 = vmul.f32 %v943, %v1053
          %v1061 = vsub.f32 0.0, %v928
          %v1062 = vsub.f32 0.0, %v930
          %v1063 = vsub.f32 0.0, %v933
          %v1064 = vsub.f32 0.0, %v935
          %v1065 = vsub.f32 0.0, %v938
          %v1066 = vsub.f32 0.0, %v940
          %v1067 = vsub.f32 0.0, %v943
          %v1068 = vsel %vm948, %v1054, %v1061
          %v1069 = vsel %vm948, %v1055, %v1062
          %v1070 = vsel %vm948, %v1056, %v1063
          %v1071 = vsel %vm948, %v1057, %v1064
          %v1072 = vsel %vm948, %v1058, %v1065
          %v1073 = vsel %vm948, %v1059, %v1066
          %v1074 = vsel %vm948, %v1060, %v1067
          %1075 = vst [vmem:[#allocation13] sm:$0xff] %v1068
          %1076 = vst [vmem:[#allocation13 + $0x8] sm:$0xff] %v1069
          %1077 = vst [vmem:[#allocation13 + $0x10] sm:$0xff] %v1070
          %1078 = vst [vmem:[#allocation13 + $0x18] sm:$0xff] %v1071
          %1079 = vst [vmem:[#allocation13 + $0x20] sm:$0xff] %v1072
          %1080 = vst [vmem:[#allocation13 + $0x28] sm:$0xff] %v1073
          %1081 = vst [vmem:[#allocation13 + $0x30] sm:$0xff] %v1074
        $region76: #{tpu_custom_call.1} parent=47 // pred_fallthru
          _
        // Predicated region
        $region77: #{tpu_custom_call.1} parent=47 // pred_check
          %p1082 = pneg %p203
        $region78: #{tpu_custom_call.1} parent=47 // pred_check_branch
          %1084 = sbr.rel (%p1082) target = $region80
        $region79: #{tpu_custom_call.1} parent=47 // pred_region
          %1086 = vsyncadd [#allocation6], 0
          %s1087 = sshll.u32 [#allocation13], 4
          %s1088 = int_to_ptr.vmem [resolvable:$true] %s1087
          %s1089 = sshll.u32 %s7, 4
          %s1090 = int_to_ptr.hbm [resolvable:$true] %s1089
          %1095 = dma.vmem_to_hbm [thread:$0]  %s1088, 896, %s1090, [#allocation6], 128, 128, 8
        $region80: #{tpu_custom_call.1} parent=47 // pred_fallthru
          _
        // Predicated region
        $region81: #{tpu_custom_call.1} parent=47 // pred_check
          %p1096 = pneg %p203
        $region82: #{tpu_custom_call.1} parent=47 // pred_check_branch
          %1098 = sbr.rel (%p1096) target = $region84
        $region83: #{tpu_custom_call.1} parent=47 // pred_region
          %1100 = dma.done [#allocation6], 896
        $region84: #{tpu_custom_call.1} parent=47 // pred_fallthru
          _
      $region48: #{tpu_custom_call.1} parent=5 // pred_fallthru
        _
      %p1101 = scmp.le.s32.totalorder 2, %s23
      // Predicated region
      $region85: #{tpu_custom_call.1} parent=5 // pred_check
        %p1102 = pneg %p1101
      $region86: #{tpu_custom_call.1} parent=5 // pred_check_branch
        %1104 = sbr.rel (%p1102) target = $region88
      $region87: #{tpu_custom_call.1} parent=5 // pred_region
        %s1105 = ssub.s32 %s23, 2
      $region88: #{tpu_custom_call.1} parent=5 // pred_fallthru
        _
    $region6: #{tpu_custom_call.1} parent=1 // loop_footer
      %s27 = sadd.s32 1, %s23
    $region7: #{tpu_custom_call.1} parent=1 // loop_footer_branch
      %22 = sbr.rel target = $region3
    $region8: #{tpu_custom_call.1} parent=1 // loop_exit
      _
    %1106 = vsyncpa [#allocation5], 1
    %s1107 = scalar_lea.sflag [#allocation5], 1
    %1108 = vsyncpa %s1107, 1
    %1109 = vsyncpa [#allocation8], 1
    %s1110 = scalar_lea.sflag [#allocation8], 1
    %1111 = vsyncpa %s1110, 1
    %1112 = vsyncpa [#allocation11], 1
    %s1113 = scalar_lea.sflag [#allocation11], 1
    %1114 = vsyncpa %s1113, 1
    %1115 = vsyncpa [#allocation6], 1
    %s1116 = scalar_lea.sflag [#allocation6], 1
    %1117 = vsyncpa %s1116, 1

</llo_original>
